<compile_context>
chip_gen: v7x
topology: tpu7x:2x2x1
jax: 0.10.0
libtpu: 0.0.40
codegen_flags: <defaults>
</compile_context>

<pallas_src>
import jax
import jax.numpy as jnp
import numpy as np
from jax.experimental import pallas as pl
from jax.experimental.pallas import tpu as pltpu

# Buffer depth for the conj-embedding stream (the largest per-step DMA).  2 = Pallas
# default double buffering; set to 3 to sweep deeper buffering (pl.Buffered) per review.
CONJ_BUFFER_DEPTH = 2


def _round_up(x, m):
    return ((x + m - 1) // m) * m


def _tpu_vmem_capacity_bytes():
    # v7x has 64 MiB VMEM per TensorCore vs 128 MiB on v5e/v6e; used to size tiles/limit.
    try:
        return int(pltpu.get_tpu_info().vmem_capacity_bytes)
    except Exception:
        return 64 << 20  # conservative default (v7x per-TensorCore VMEM)


def _choose_tile_i(S, target_rows):
    # TILE_I must be a multiple of 8 (sublane constraint of the (TILE_I, D) blocks) or
    # equal to S (full-dim block).  TILE_I * S_pad span rows are processed per grid step.
    if S <= 8 or S * S <= target_rows:
        return S
    ti = max(8, ((target_rows // S) // 8) * 8)
    return S if ti >= S else ti


# ----------------------------------------------------------------------------
# Fused span-score kernel: one program per (sentence, i-tile).
#   fence_i (TILE_I, D) f32   : fence[i] rows of this tile
#   fence_j (S_pad, D)  f32   : fence[j+1] for the whole sentence (zero-padded to S_pad)
#   mod     (TILE_I, D) f32   : W_mod(mod_emb)[i] rows of this tile
#   conj    (TILE_SS, Ec) bf16: conj embeddings, rows ordered i-major (stride S_pad)
#   wconj (Ec, D), f1w (D, H), f2w (H, Lpad)  bf16 weights
#   vecs  (8, Wvec) f32       : [wconj_b, f1_b, ln_gamma, ln_beta, f2_b, 0, 0, 0]
#   out   (TILE_SS, Lpad) bf16: lane-dense span scores (labels 0..L-1, rest padding)
# ----------------------------------------------------------------------------
def _span_score_kernel(fence_i_ref, fence_j_ref, mod_ref, conj_ref,
                       wconj_ref, f1w_ref, f2w_ref, vecs_ref, out_ref):
    tile_i, D = fence_i_ref.shape
    S_pad = fence_j_ref.shape[0]
    H = f1w_ref.shape[1]
    Lpad = f2w_ref.shape[1]
    tile_ss = tile_i * S_pad

    wconj_b = vecs_ref[0:1, :D]      # (1, D)
    f1_b = vecs_ref[1:2, :H]         # (1, H)
    ln_g = vecs_ref[2:3, :H]         # (1, H)
    ln_b = vecs_ref[3:4, :H]         # (1, H)
    f2_b = vecs_ref[4:5, :Lpad]      # (1, Lpad), zero in padded lanes

    # delta[i, j] = fence[j+1] - fence[i]; mod broadcast over j — both built here in
    # VMEM instead of materializing (SS, D) slabs in HBM.  S_pad % 8 == 0 so the
    # (tile_i, S_pad, D) -> (tile_ss, D) collapse is layout-preserving (no repack).
    fence_i = fence_i_ref[...]                                           # (tile_i, D)
    fence_j = fence_j_ref[...]                                           # (S_pad, D)
    delta = (jnp.broadcast_to(fence_j[None, :, :], (tile_i, S_pad, D))
             - jnp.broadcast_to(fence_i[:, None, :], (tile_i, S_pad, D))
             ).reshape(tile_ss, D)                                       # f32
    mod = jnp.broadcast_to(mod_ref[...][:, None, :],
                           (tile_i, S_pad, D)).reshape(tile_ss, D)       # f32

    # Fused W_conj projection: K=128 contraction, bf16 operands, f32 MXU accumulation.
    conj_proj = jnp.dot(conj_ref[...], wconj_ref[...],
                        preferred_element_type=jnp.float32) + wconj_b    # (tile_ss, D) f32

    # span_features = W_conj(conj_emb) * delta_h + W_mod(mod_emb)        (all f32)
    feat = conj_proj * delta + mod

    # f_label: Linear -> LayerNorm(eps=1e-5, f32) -> ReLU -> Linear (Lpad lane-dense)
    h = jnp.dot(feat.astype(jnp.bfloat16), f1w_ref[...],
                preferred_element_type=jnp.float32) + f1_b
    mu = jnp.mean(h, axis=-1, keepdims=True)
    var = jnp.mean(jnp.square(h - mu), axis=-1, keepdims=True)
    hn = (h - mu) * jax.lax.rsqrt(var + 1e-5) * ln_g + ln_b
    hr = jnp.maximum(hn, 0.0)

    out = jnp.dot(hr.astype(jnp.bfloat16), f2w_ref[...],
                  preferred_element_type=jnp.float32) + f2_b
    out_ref[...] = out.astype(out_ref.dtype)


def pallas_span_scores(fence_i, fence_j, mod_proj, conj_flat,
                       wconj_w, f1_w, f2_w_pad, vecs, *, tile_i, vmem_cap):
    B, S, D = fence_i.shape          # S = Smin (i axis), fence_j has S_pad rows
    S_pad = fence_j.shape[1]
    Ec = conj_flat.shape[-1]
    H = f1_w.shape[1]
    Lpad = f2_w_pad.shape[1]
    Wvec = vecs.shape[1]
    SSp = S * S_pad                  # padded span-row count per sentence
    tile_ss = tile_i * S_pad
    n_i_tiles = pl.cdiv(S, tile_i)

    # Advisory cost estimate so XLA overlaps the jnp prologue/epilogue around the call.
    flops = 2 * B * SSp * (Ec * D + D * H + H * Lpad)
    bytes_accessed = (B * SSp * Ec * 2 + B * SSp * Lpad * 2       # conj in, scores out
                      + 3 * B * S * D * 4                          # fence_i/j, mod_proj
                      + (Ec * D + D * H + H * Lpad) * 2 + 8 * Wvec * 4)
    cost = pl.CostEstimate(flops=flops, transcendentals=B * SSp,
                           bytes_accessed=bytes_accessed)

    # VMEM budget: double-buffered per-step blocks + once-resident weights + f32 scratch.
    est = (2 * (2 * tile_i * D * 4 + tile_ss * Ec * 2 + tile_ss * Lpad * 2
                + S_pad * D * 4 + (Ec * D + D * H + H * Lpad) * 2 + 8 * Wvec * 4)
           + tile_ss * (3 * D + H + Lpad) * 4)
    vmem_limit = int(min(max(32 << 20, 2 * est), max(vmem_cap - (16 << 20), 32 << 20)))

    conj_index_map = lambda b, t: (b, t, 0)
    if CONJ_BUFFER_DEPTH != 2:
        conj_spec = pl.BlockSpec((None, tile_ss, Ec), conj_index_map,
                                 pipeline_mode=pl.Buffered(CONJ_BUFFER_DEPTH))
    else:
        conj_spec = pl.BlockSpec((None, tile_ss, Ec), conj_index_map)

    return pl.pallas_call(
        _span_score_kernel,
        out_shape=jax.ShapeDtypeStruct((B, SSp, Lpad), jnp.bfloat16),
        grid=(B, n_i_tiles),
        in_specs=[
            pl.BlockSpec((None, tile_i, D), lambda b, t: (b, t, 0)),   # fence[i] (per tile)
            pl.BlockSpec((None, S_pad, D), lambda b, t: (b, 0, 0)),    # fence[j+1] (per sent.)
            pl.BlockSpec((None, tile_i, D), lambda b, t: (b, t, 0)),   # W_mod(mod_emb)[i]
            conj_spec,                                                 # conj embeddings (bf16)
            pl.BlockSpec((Ec, D), lambda b, t: (0, 0)),                # W_conj (bf16)
            pl.BlockSpec((D, H), lambda b, t: (0, 0)),                 # f_label Linear 1 (bf16)
            pl.BlockSpec((H, Lpad), lambda b, t: (0, 0)),              # f_label Linear 2 (bf16)
            pl.BlockSpec((8, Wvec), lambda b, t: (0, 0)),              # packed biases / LN (f32)
        ],
        out_specs=pl.BlockSpec((None, tile_ss, Lpad), lambda b, t: (b, t, 0)),
        compiler_params=pltpu.CompilerParams(
            dimension_semantics=("parallel", "parallel"),
            vmem_limit_bytes=vmem_limit),
        cost_estimate=cost,
    )(fence_i, fence_j, mod_proj, conj_flat, wconj_w, f1_w, f2_w_pad, vecs)


# ----------------------------------------------------------------------------
# Forward pass.  The tiny prologue (projections, embedding gathers, fencepost split)
# and epilogue (slice padding, zero label column) stay in plain jnp so XLA fuses them;
# the span-score hot path runs in the fused, tiled Pallas kernel.
# ----------------------------------------------------------------------------
def chart_parser_forward(params, features, valid_token_mask, mod_indices, conj_indices,
                         *, tile_rows=None):
    B, T, _ = features.shape
    D = params["proj_w"].shape[1]          # d_model
    half = D // 2
    S = T - 2                              # number of words (span grid side)
    H = params["f1_w"].shape[1]            # d_label_hidden
    L = params["f2_w"].shape[1]            # num labels (before the implicit zero column)
    Lpad = _round_up(L, 128)
    Wvec = _round_up(max(D, H, Lpad), 128)

    vmem_cap = _tpu_vmem_capacity_bytes()
    if tile_rows is None:
        tile_rows = 1024 if vmem_cap >= (96 << 20) else 512   # v5e/v6e vs v7x

    # ----- prologue: cheap projections & gathers (left to XLA) -----
    feats = jnp.where(valid_token_mask[:, :, None], features, 0.0).astype(jnp.float32)
    ann = feats @ params["proj_w"]                                             # (B, T, D)
    fence = jnp.concatenate([ann[:, :-1, :half], ann[:, 1:, half:]], axis=-1)  # (B, T-1, D)

    mod_emb = jnp.take(params["mod_emb"], mod_indices, axis=0)                 # (B, Lm, Em)
    mod_proj = mod_emb @ params["wmod_w"] + params["wmod_b"]                   # (B, Lm, D)
    conj_emb = jnp.take(params["conj_emb"].astype(jnp.bfloat16),
                        conj_indices, axis=0)                                  # (B,Lc,Lc,Ec)
    Lc, Ec = conj_emb.shape[1], conj_emb.shape[-1]

    # min-dim cropping from the reference forward (identity for correctly collated
    # batches).  As in the PyTorch module, a mod sequence shorter than the span grid
    # cannot be broadcast — raise instead of silently changing the output shape.
    Smin = min(S, Lc)
    if mod_proj.shape[1] < Smin:
        raise ValueError("mod_indices shorter than the span grid (would not broadcast)")
    S_pad = _round_up(Smin, 8)             # j axis padded for aligned blocks / reshapes
    SSp = Smin * S_pad

    fence_i = fence[:, :Smin, :].astype(jnp.float32)                           # (B, Smin, D)
    fence_j = fence[:, 1:Smin + 1, :].astype(jnp.float32)                      # (B, Smin, D)
    if S_pad != Smin:
        fence_j = jnp.concatenate(
            [fence_j, jnp.zeros((B, S_pad - Smin, D), jnp.float32)], axis=1)   # (B, S_pad, D)
    mod_proj = mod_proj[:, :Smin, :].astype(jnp.float32)                       # (B, Smin, D)

    conj_crop = conj_emb[:, :Smin, :Smin, :]
    if S_pad != Smin:
        conj_pad = jnp.zeros((B, Smin, S_pad, Ec), jnp.bfloat16)
        conj_crop = conj_pad.at[:, :, :Smin, :].set(conj_crop)
    conj_flat = conj_crop.reshape(B, SSp, Ec)                                  # (B, SSp, Ec)

    # Pack weights: pad f_label's second Linear to Lpad lanes; pack the five small
    # bias / LayerNorm vectors into one (8, Wvec) f32 operand.
    f2_w_pad = jnp.zeros((H, Lpad), jnp.float32).at[:, :L].set(params["f2_w"])
    vecs = jnp.zeros((8, Wvec), jnp.float32)
    vecs = vecs.at[0, :D].set(params["wconj_b"])
    vecs = vecs.at[1, :H].set(params["f1_b"])
    vecs = vecs.at[2, :H].set(params["ln_g"])
    vecs = vecs.at[3, :H].set(params["ln_b"])
    vecs = vecs.at[4, :L].set(params["f2_b"])

    tile_i = _choose_tile_i(Smin, tile_rows)

    scores_pad = pallas_span_scores(
        fence_i, fence_j, mod_proj, conj_flat,
        params["wconj_w"].astype(jnp.bfloat16),
        params["f1_w"].astype(jnp.bfloat16),
        f2_w_pad.astype(jnp.bfloat16),
        vecs,
        tile_i=tile_i, vmem_cap=vmem_cap)                                      # (B,SSp,Lpad) bf16

    # ----- epilogue: drop lane / j padding, restore f32, prepend the zero label column.
    sc = scores_pad[:, :, :L].astype(jnp.float32).reshape(B, Smin, S_pad, L)[:, :, :Smin, :]
    span_scores = jnp.concatenate(
        [jnp.zeros(sc.shape[:-1] + (1,), sc.dtype), sc], axis=-1)
    tag_scores = None  # hparams.predict_tags = False
    return span_scores, tag_scores


# Pure-JAX (f32) reference mirroring the PyTorch forward, for correctness checking.
def chart_parser_reference(params, features, valid_token_mask, mod_indices, conj_indices):
    D = params["proj_w"].shape[1]
    half = D // 2
    feats = jnp.where(valid_token_mask[:, :, None], features, 0.0)
    ann = feats @ params["proj_w"]
    fence = jnp.concatenate([ann[:, :-1, :half], ann[:, 1:, half:]], axis=-1)
    delta_h = (fence[:, None, :, :] - fence[:, :, None, :])[:, :-1, 1:]        # (B,S,S,D)
    mod_proj = (jnp.take(params["mod_emb"], mod_indices, axis=0) @ params["wmod_w"]
                + params["wmod_b"])
    conj_proj = (jnp.take(params["conj_emb"], conj_indices, axis=0) @ params["wconj_w"]
                 + params["wconj_b"])
    S = min(delta_h.shape[1], conj_proj.shape[1])
    span_feat = (conj_proj[:, :S, :S, :] * delta_h[:, :S, :S, :]
                 + mod_proj[:, :S, None, :])
    h = span_feat @ params["f1_w"] + params["f1_b"]
    mu = jnp.mean(h, axis=-1, keepdims=True)
    var = jnp.mean(jnp.square(h - mu), axis=-1, keepdims=True)
    hn = (h - mu) * jax.lax.rsqrt(var + 1e-5) * params["ln_g"] + params["ln_b"]
    sc = jnp.maximum(hn, 0.0) @ params["f2_w"] + params["f2_b"]
    sc = jnp.concatenate([jnp.zeros(sc.shape[:-1] + (1,), sc.dtype), sc], axis=-1)
    return sc, None


# ----------------------------------------------------------------------------
def _make_params(key, d_pretrained, d_model, d_label_hidden, num_labels,
                 mod_vocab=128, conj_vocab=128, mod_dim=128, conj_dim=128):
    ks = jax.random.split(key, 11)
    return {
        "proj_w": jax.random.normal(ks[0], (d_pretrained, d_model), jnp.float32) * 0.05,
        "mod_emb": jax.random.normal(ks[1], (mod_vocab, mod_dim), jnp.float32) * 0.05,
        "wmod_w": jax.random.normal(ks[2], (mod_dim, d_model), jnp.float32) * 0.05,
        "wmod_b": jax.random.normal(ks[3], (d_model,), jnp.float32) * 0.05,
        "conj_emb": jax.random.normal(ks[4], (conj_vocab, conj_dim), jnp.float32) * 0.05,
        "wconj_w": jax.random.normal(ks[5], (conj_dim, d_model), jnp.float32) * 0.05,
        "wconj_b": jax.random.normal(ks[6], (d_model,), jnp.float32) * 0.05,
        "f1_w": jax.random.normal(ks[7], (d_model, d_label_hidden), jnp.float32) * 0.05,
        "f1_b": jax.random.normal(ks[8], (d_label_hidden,), jnp.float32) * 0.05,
        "ln_g": jnp.ones((d_label_hidden,), jnp.float32),
        "ln_b": jnp.zeros((d_label_hidden,), jnp.float32),
        "f2_w": jax.random.normal(ks[9], (d_label_hidden, num_labels), jnp.float32) * 0.05,
        "f2_b": jax.random.normal(ks[10], (num_labels,), jnp.float32) * 0.05,
    }


def _run_case(key, params, B, num_words, d_pretrained, num_labels, tile_rows):
    T = num_words + 2
    S = T - 2
    mod_vocab = params["mod_emb"].shape[0]
    conj_vocab = params["conj_emb"].shape[0]
    ks = jax.random.split(key, 3)
    features = jax.random.normal(ks[0], (B, T, d_pretrained), jnp.float32)
    valid_token_mask = jnp.ones((B, T), jnp.bool_)
    mod_indices = jax.random.randint(ks[1], (B, S), 0, mod_vocab, jnp.int32)
    conj_indices = jax.random.randint(ks[2], (B, S, S), 0, conj_vocab, jnp.int32)

    forward = jax.jit(chart_parser_forward, static_argnames=("tile_rows",))
    span_scores, tag_scores = forward(params, features, valid_token_mask,
                                      mod_indices, conj_indices, tile_rows=tile_rows)
    span_scores = jax.block_until_ready(span_scores)

    ref_scores, _ = chart_parser_reference(params, features, valid_token_mask,
                                           mod_indices, conj_indices)
    assert span_scores.shape == (B, S, S, num_labels + 1), span_scores.shape
    assert tag_scores is None
    # bf16 MXU operands + bf16 writeback => bf16-scale tolerance vs the f32 reference.
    np.testing.assert_allclose(np.asarray(span_scores), np.asarray(ref_scores),
                               rtol=5e-2, atol=2e-2)


if __name__ == "__main__":
    B = 2
    d_pretrained = 64
    d_model = 32
    d_label_hidden = 32
    num_labels = 16

    key = jax.random.PRNGKey(0)
    kp, k1, k2 = jax.random.split(key, 3)
    params = _make_params(kp, d_pretrained, d_model, d_label_hidden, num_labels)

    # Case 1: short sentence -> single span tile per sentence (whole-grid block).
    _run_case(k1, params, B, num_words=8, d_pretrained=d_pretrained,
              num_labels=num_labels, tile_rows=None)
    # Case 2: longer sentence with a small tile target -> multi-tile SS grid axis,
    # including a ragged final i-tile and a j axis padded to a multiple of 8.
    _run_case(k2, params, B, num_words=13, d_pretrained=d_pretrained,
              num_labels=num_labels, tile_rows=128)

    print("KERNEL_OK")
</pallas_src>

<mosaic_0001>
module attributes {stable_mosaic.version = 11 : i64} {
  func.func @_span_score_kernel(%arg0: i32, %arg1: i32, %arg2: memref<1x8x32xf32, #tpu.memory_space<vmem>>, %arg3: memref<1x8x32xf32, #tpu.memory_space<vmem>>, %arg4: memref<1x8x32xf32, #tpu.memory_space<vmem>>, %arg5: memref<1x64x128xbf16, #tpu.memory_space<vmem>>, %arg6: memref<128x32xbf16, #tpu.memory_space<vmem>>, %arg7: memref<32x32xbf16, #tpu.memory_space<vmem>>, %arg8: memref<32x128xbf16, #tpu.memory_space<vmem>>, %arg9: memref<8x128xf32, #tpu.memory_space<vmem>>, %arg10: memref<1x64x128xbf16, #tpu.memory_space<vmem>>) attributes {dimension_semantics = [#tpu.dimension_semantics<parallel>, #tpu.dimension_semantics<parallel>], iteration_bounds = array<i64: 2, 1>, scalar_prefetch = 0 : i64, scratch_operands = 0 : i64, tpu.core_type = #tpu.core_type<tc>, window_params = [{transform_indices = @transform_0, window_bounds = array<i64: 1, 8, 32>}, {transform_indices = @transform_1, window_bounds = array<i64: 1, 8, 32>}, {transform_indices = @transform_2, window_bounds = array<i64: 1, 8, 32>}, {transform_indices = @transform_3, window_bounds = array<i64: 1, 64, 128>}, {pipeline_mode = #tpu.pipeline_mode<synchronous>, transform_indices = @transform_4, window_bounds = array<i64: 128, 32>}, {pipeline_mode = #tpu.pipeline_mode<synchronous>, transform_indices = @transform_5, window_bounds = array<i64: 32, 32>}, {pipeline_mode = #tpu.pipeline_mode<synchronous>, transform_indices = @transform_6, window_bounds = array<i64: 32, 128>}, {pipeline_mode = #tpu.pipeline_mode<synchronous>, transform_indices = @transform_7, window_bounds = array<i64: 8, 128>}, {transform_indices = @transform_8, window_bounds = array<i64: 1, 64, 128>}]} {
    %c0 = arith.constant 0 : index
    %c0_0 = arith.constant 0 : index
    %0 = vector.load %arg9[%c0, %c0_0] : memref<8x128xf32, #tpu.memory_space<vmem>>, vector<1x32xf32>
    %c1 = arith.constant 1 : index
    %c0_1 = arith.constant 0 : index
    %1 = vector.load %arg9[%c1, %c0_1] : memref<8x128xf32, #tpu.memory_space<vmem>>, vector<1x32xf32>
    %c2 = arith.constant 2 : index
    %c0_2 = arith.constant 0 : index
    %2 = vector.load %arg9[%c2, %c0_2] : memref<8x128xf32, #tpu.memory_space<vmem>>, vector<1x32xf32>
    %c3 = arith.constant 3 : index
    %c0_3 = arith.constant 0 : index
    %3 = vector.load %arg9[%c3, %c0_3] : memref<8x128xf32, #tpu.memory_space<vmem>>, vector<1x32xf32>
    %c4 = arith.constant 4 : index
    %c0_4 = arith.constant 0 : index
    %4 = vector.load %arg9[%c4, %c0_4] : memref<8x128xf32, #tpu.memory_space<vmem>>, vector<1x128xf32>
    %c0_5 = arith.constant 0 : index
    %c0_6 = arith.constant 0 : index
    %c0_7 = arith.constant 0 : index
    %5 = vector.load %arg2[%c0_5, %c0_6, %c0_7] : memref<1x8x32xf32, #tpu.memory_space<vmem>>, vector<1x8x32xf32>
    %6 = vector.shape_cast %5 : vector<1x8x32xf32> to vector<8x32xf32>
    %c0_8 = arith.constant 0 : index
    %c0_9 = arith.constant 0 : index
    %c0_10 = arith.constant 0 : index
    %7 = vector.load %arg3[%c0_8, %c0_9, %c0_10] : memref<1x8x32xf32, #tpu.memory_space<vmem>>, vector<1x8x32xf32>
    %8 = vector.shape_cast %7 : vector<1x8x32xf32> to vector<8x32xf32>
    %9 = vector.shape_cast %8 : vector<8x32xf32> to vector<1x8x32xf32>
    %10 = vector.shape_cast %9 : vector<1x8x32xf32> to vector<1x8x32xf32>
    %11 = vector.broadcast %10 : vector<1x8x32xf32> to vector<8x8x32xf32>
    %12 = vector.shape_cast %6 : vector<8x32xf32> to vector<8x1x32xf32>
    %13 = vector.shape_cast %12 : vector<8x1x32xf32> to vector<8x1x32xf32>
    %14 = vector.broadcast %13 : vector<8x1x32xf32> to vector<8x8x32xf32>
    %15 = arith.subf %11, %14 : vector<8x8x32xf32>
    %16 = vector.shape_cast %15 : vector<8x8x32xf32> to vector<64x32xf32>
    %c0_11 = arith.constant 0 : index
    %c0_12 = arith.constant 0 : index
    %c0_13 = arith.constant 0 : index
    %17 = vector.load %arg4[%c0_11, %c0_12, %c0_13] : memref<1x8x32xf32, #tpu.memory_space<vmem>>, vector<1x8x32xf32>
    %18 = vector.shape_cast %17 : vector<1x8x32xf32> to vector<8x32xf32>
    %19 = vector.shape_cast %18 : vector<8x32xf32> to vector<8x1x32xf32>
    %20 = vector.shape_cast %19 : vector<8x1x32xf32> to vector<8x1x32xf32>
    %21 = vector.broadcast %20 : vector<8x1x32xf32> to vector<8x8x32xf32>
    %22 = vector.shape_cast %21 : vector<8x8x32xf32> to vector<64x32xf32>
    %c0_14 = arith.constant 0 : index
    %c0_15 = arith.constant 0 : index
    %c0_16 = arith.constant 0 : index
    %23 = vector.load %arg5[%c0_14, %c0_15, %c0_16] : memref<1x64x128xbf16, #tpu.memory_space<vmem>>, vector<1x64x128xbf16>
    %24 = vector.shape_cast %23 : vector<1x64x128xbf16> to vector<64x128xbf16>
    %c0_17 = arith.constant 0 : index
    %c0_18 = arith.constant 0 : index
    %25 = vector.load %arg6[%c0_17, %c0_18] : memref<128x32xbf16, #tpu.memory_space<vmem>>, vector<128x32xbf16>
    %cst = arith.constant dense<0.000000e+00> : vector<64x32xf32>
    %26 = tpu.matmul %24, %25, %cst {dimension_numbers = #tpu.dot_dimension_numbers<[1], [0], [0], [1], [0, 0, 1, 1], [], []>} : vector<64x128xbf16>, vector<128x32xbf16>, vector<64x32xf32> -> vector<64x32xf32>
    %27 = vector.broadcast %0 : vector<1x32xf32> to vector<64x32xf32>
    %28 = arith.addf %26, %27 : vector<64x32xf32>
    %29 = arith.mulf %28, %16 : vector<64x32xf32>
    %30 = arith.addf %29, %22 : vector<64x32xf32>
    %31 = arith.truncf %30 : vector<64x32xf32> to vector<64x32xbf16>
    %c0_19 = arith.constant 0 : index
    %c0_20 = arith.constant 0 : index
    %32 = vector.load %arg7[%c0_19, %c0_20] : memref<32x32xbf16, #tpu.memory_space<vmem>>, vector<32x32xbf16>
    %cst_21 = arith.constant dense<0.000000e+00> : vector<64x32xf32>
    %33 = tpu.matmul %31, %32, %cst_21 {dimension_numbers = #tpu.dot_dimension_numbers<[1], [0], [0], [1], [0, 0, 1, 1], [], []>} : vector<64x32xbf16>, vector<32x32xbf16>, vector<64x32xf32> -> vector<64x32xf32>
    %34 = vector.broadcast %1 : vector<1x32xf32> to vector<64x32xf32>
    %35 = arith.addf %33, %34 : vector<64x32xf32>
    %cst_22 = arith.constant dense<0.000000e+00> : vector<64xf32>
    %36 = vector.multi_reduction <add>, %35, %cst_22 [1] : vector<64x32xf32> to vector<64xf32>
    %37 = vector.shape_cast %36 : vector<64xf32> to vector<64x1xf32>
    %cst_23 = arith.constant 3.200000e+01 : f32
    %38 = vector.broadcast %cst_23 : f32 to vector<64x1xf32>
    %39 = arith.divf %37, %38 : vector<64x1xf32>
    %40 = vector.broadcast %39 : vector<64x1xf32> to vector<64x32xf32>
    %41 = arith.subf %35, %40 : vector<64x32xf32>
    %42 = arith.mulf %41, %41 : vector<64x32xf32>
    %cst_24 = arith.constant dense<0.000000e+00> : vector<64xf32>
    %43 = vector.multi_reduction <add>, %42, %cst_24 [1] : vector<64x32xf32> to vector<64xf32>
    %44 = vector.shape_cast %43 : vector<64xf32> to vector<64x1xf32>
    %cst_25 = arith.constant 3.200000e+01 : f32
    %45 = vector.broadcast %cst_25 : f32 to vector<64x1xf32>
    %46 = arith.divf %44, %45 : vector<64x1xf32>
    %47 = vector.broadcast %39 : vector<64x1xf32> to vector<64x32xf32>
    %48 = arith.subf %35, %47 : vector<64x32xf32>
    %cst_26 = arith.constant 9.99999974E-6 : f32
    %49 = vector.broadcast %cst_26 : f32 to vector<64x1xf32>
    %50 = arith.addf %46, %49 : vector<64x1xf32>
    %51 = math.rsqrt %50 : vector<64x1xf32>
    %52 = vector.broadcast %51 : vector<64x1xf32> to vector<64x32xf32>
    %53 = arith.mulf %48, %52 : vector<64x32xf32>
    %54 = vector.broadcast %2 : vector<1x32xf32> to vector<64x32xf32>
    %55 = arith.mulf %53, %54 : vector<64x32xf32>
    %56 = vector.broadcast %3 : vector<1x32xf32> to vector<64x32xf32>
    %57 = arith.addf %55, %56 : vector<64x32xf32>
    %cst_27 = arith.constant 0.000000e+00 : f32
    %58 = vector.broadcast %cst_27 : f32 to vector<64x32xf32>
    %59 = arith.maximumf %57, %58 : vector<64x32xf32>
    %60 = arith.truncf %59 : vector<64x32xf32> to vector<64x32xbf16>
    %c0_28 = arith.constant 0 : index
    %c0_29 = arith.constant 0 : index
    %61 = vector.load %arg8[%c0_28, %c0_29] : memref<32x128xbf16, #tpu.memory_space<vmem>>, vector<32x128xbf16>
    %cst_30 = arith.constant dense<0.000000e+00> : vector<64x128xf32>
    %62 = tpu.matmul %60, %61, %cst_30 {dimension_numbers = #tpu.dot_dimension_numbers<[1], [0], [0], [1], [0, 0, 1, 1], [], []>} : vector<64x32xbf16>, vector<32x128xbf16>, vector<64x128xf32> -> vector<64x128xf32>
    %63 = vector.broadcast %4 : vector<1x128xf32> to vector<64x128xf32>
    %64 = arith.addf %62, %63 : vector<64x128xf32>
    %65 = arith.truncf %64 : vector<64x128xf32> to vector<64x128xbf16>
    %c0_31 = arith.constant 0 : index
    %c0_32 = arith.constant 0 : index
    %c0_33 = arith.constant 0 : index
    %66 = vector.load %arg10[%c0_31, %c0_32, %c0_33] : memref<1x64x128xbf16, #tpu.memory_space<vmem>>, vector<1x64x128xbf16>
    %67 = vector.shape_cast %66 : vector<1x64x128xbf16> to vector<64x128xbf16>
    %68 = vector.shape_cast %65 : vector<64x128xbf16> to vector<1x64x128xbf16>
    tpu.vector_store %arg10[%c0_31, %c0_32, %c0_33], %68 {strides = array<i32>} : memref<1x64x128xbf16, #tpu.memory_space<vmem>>, vector<1x64x128xbf16>,
    return
  }
  func.func @transform_0(%arg0: i32, %arg1: i32) -> (i32, i32, i32) {
    %c0_i32 = arith.constant 0 : i32
    %c0_i32_0 = arith.constant 0 : i32
    return %arg0, %arg1, %c0_i32 : i32, i32, i32
  }
  func.func @transform_1(%arg0: i32, %arg1: i32) -> (i32, i32, i32) {
    %c0_i32 = arith.constant 0 : i32
    %c0_i32_0 = arith.constant 0 : i32
    %c0_i32_1 = arith.constant 0 : i32
    return %arg0, %c0_i32, %c0_i32_0 : i32, i32, i32
  }
  func.func @transform_2(%arg0: i32, %arg1: i32) -> (i32, i32, i32) {
    %c0_i32 = arith.constant 0 : i32
    %c0_i32_0 = arith.constant 0 : i32
    return %arg0, %arg1, %c0_i32 : i32, i32, i32
  }
  func.func @transform_3(%arg0: i32, %arg1: i32) -> (i32, i32, i32) {
    %c0_i32 = arith.constant 0 : i32
    %c0_i32_0 = arith.constant 0 : i32
    return %arg0, %arg1, %c0_i32 : i32, i32, i32
  }
  func.func @transform_4(%arg0: i32, %arg1: i32) -> (i32, i32) {
    %c0_i32 = arith.constant 0 : i32
    %c0_i32_0 = arith.constant 0 : i32
    %c0_i32_1 = arith.constant 0 : i32
    return %c0_i32, %c0_i32_0 : i32, i32
  }
  func.func @transform_5(%arg0: i32, %arg1: i32) -> (i32, i32) {
    %c0_i32 = arith.constant 0 : i32
    %c0_i32_0 = arith.constant 0 : i32
    %c0_i32_1 = arith.constant 0 : i32
    return %c0_i32, %c0_i32_0 : i32, i32
  }
  func.func @transform_6(%arg0: i32, %arg1: i32) -> (i32, i32) {
    %c0_i32 = arith.constant 0 : i32
    %c0_i32_0 = arith.constant 0 : i32
    %c0_i32_1 = arith.constant 0 : i32
    return %c0_i32, %c0_i32_0 : i32, i32
  }
  func.func @transform_7(%arg0: i32, %arg1: i32) -> (i32, i32) {
    %c0_i32 = arith.constant 0 : i32
    %c0_i32_0 = arith.constant 0 : i32
    %c0_i32_1 = arith.constant 0 : i32
    return %c0_i32, %c0_i32_0 : i32, i32
  }
  func.func @transform_8(%arg0: i32, %arg1: i32) -> (i32, i32, i32) {
    %c0_i32 = arith.constant 0 : i32
    %c0_i32_0 = arith.constant 0 : i32
    return %arg0, %arg1, %c0_i32 : i32, i32, i32
  }
}

</mosaic_0001>

<llo_original>
// kernel: chart_parser_forward.1
$region0: #{chart_parser_forward.1}
  #allocation0 [shape = 'u32[]', space=smem, size = 0x4, offset = 0x4, fixed_abs, tag = 'smem constant byte address 0x4 - core index']
  #allocation1 [shape = 'u32[144,128]{1,0:T(1,128)}', space=vmem, size = 0x12000, scoped, tag = 'internal scratch']
  %s0 = inlined_call_operand.vmem [shape: f32[2,8,32], index: 0, kind: input, shape index: {}]
  %s1 = inlined_call_operand.vmem [shape: f32[2,8,32], index: 1, kind: input, shape index: {}]
  %s2 = inlined_call_operand.vmem [shape: f32[2,8,32], index: 2, kind: input, shape index: {}]
  %s3 = inlined_call_operand.vmem [shape: bf16[2,64,128], index: 3, kind: input, shape index: {}]
  %s4 = inlined_call_operand.vmem [shape: bf16[128,32], index: 4, kind: input, shape index: {}]
  %s5 = inlined_call_operand.vmem [shape: bf16[32,32], index: 5, kind: input, shape index: {}]
  %s6 = inlined_call_operand.vmem [shape: bf16[32,128], index: 6, kind: input, shape index: {}]
  %s7 = inlined_call_operand.vmem [shape: f32[8,128], index: 7, kind: input, shape index: {}]
  %s8 = inlined_call_operand.vmem [shape: bf16[2,64,128], index: 8, kind: output, shape index: {}]
  %s9 = sld [smem:[#allocation0]]
  $region65: #{chart_parser_forward.1} parent=0
    _
  %s11 = ssub.s32 1, %s9
  %s12 = scalar_select 0, %s11, %s9
  loop: start=0, step=1, limit=4
  $region2: #{chart_parser_forward.1} parent=0 // loop_pre_header
    _
  $region3: #{chart_parser_forward.1} parent=0 // loop_header
    %s14 = sphi 0, %s18
    %p15 = scmp.ge.s32.totalorder %s14, 4
    %s21 = sphi 0, %s33
    %s22 = sphi 0, %s29
    %s23 = sphi 0, %s21
    %s24 = sphi 0, %s22
    %s25 = sphi 0, %s23
    %s26 = sphi 0, %s24
    %s38 = sphi 0, %s40
    %s41 = sphi 0, %s38
    %s42 = sphi 0, %s41
    %s58 = sphi 0, %s42
    %s64 = sphi 0, %s66
    %s67 = sphi 0, %s64
    %s68 = sphi 0, %s67
    %s84 = sphi 0, %s68
    %s92 = sphi 0, %s94
    %s95 = sphi 0, %s92
    %s96 = sphi 0, %s95
    %s112 = sphi 0, %s96
    %s120 = sphi 0, %s122
    %s123 = sphi 0, %s120
    %s124 = sphi 0, %s123
    %s140 = sphi 0, %s124
    %s144 = sphi 0, %s144
    %s146 = sphi 0, %s144
    %s147 = sphi 0, %s146
    %s161 = sphi 0, %s147
    %s165 = sphi 0, %s165
    %s167 = sphi 0, %s165
    %s168 = sphi 0, %s167
    %s182 = sphi 0, %s168
    %s186 = sphi 0, %s186
    %s188 = sphi 0, %s186
    %s189 = sphi 0, %s188
    %s203 = sphi 0, %s189
    %s207 = sphi 0, %s207
    %s209 = sphi 0, %s207
    %s210 = sphi 0, %s209
    %s224 = sphi 0, %s210
    %s232 = sphi 0, %s234
    %s235 = sphi 0, %s232
    %s236 = sphi 0, %s235
    %s252 = sphi 0, %s236
  $region4: #{chart_parser_forward.1} parent=0 // loop_header_branch
    %17 = sbr.rel (%p15) target = $region8
  $region5: #{chart_parser_forward.1} parent=0 // loop_body
    %s19 = ssub.s32 %s14, 1
    %s20 = ssub.s32 %s14, 2
    %s27 = sadd.s32 1, %s22
    %p28 = scmp.ge.s32.totalorder %s27, 1
    %s29 = scalar_select %p28, 0, %s27
    %s30 = sadd.s32 1, %s21
    %s31 = scalar_select %p28, %s30, %s21
    %p32 = scmp.ge.s32.totalorder %s31, 2
    %s33 = scalar_select %p32, 0, %s31
    %s34 = ssub.s32 %s21, %s33
    %s35 = ssub.s32 %s22, %s29
    %s36 = sor.u32 %s34, %s35
    %p37 = scmp.eq.s32.totalorder %s36, 0
    %s39 = sadd.s32 %s38, 1
    %s40 = scalar_select %p37, %s38, %s39
    %p43 = pneg %p37
    %p44 = scmp.eq.s32.totalorder %s14, 1
    %p45 = por %p43, %p44
    %p46 = scmp.ne.s32.totalorder %s38, %s41
    %p47 = scmp.eq.s32.totalorder %s14, 0
    %p48 = por %p46, %p47
    %p49 = scmp.ne.s32.totalorder %s38, %s41
    %p50 = scmp.eq.s32.totalorder %s19, 1
    %p51 = por %p49, %p50
    %p52 = scmp.ne.s32.totalorder %s41, %s42
    %p53 = scmp.eq.s32.totalorder %s19, 0
    %p54 = por %p52, %p53
    %p55 = scmp.ne.s32.totalorder %s41, %s42
    %p56 = scmp.eq.s32.totalorder %s20, 1
    %p57 = por %p55, %p56
    %p59 = scmp.ne.s32.totalorder %s42, %s58
    %p60 = scmp.eq.s32.totalorder %s20, 0
    %p61 = por %p59, %p60
    %s62 = ssub.s32 %s21, %s33
    %p63 = scmp.eq.s32.totalorder %s62, 0
    %s65 = sadd.s32 %s64, 1
    %s66 = scalar_select %p63, %s64, %s65
    %p69 = pneg %p63
    %p70 = scmp.eq.s32.totalorder %s14, 1
    %p71 = por %p69, %p70
    %p72 = scmp.ne.s32.totalorder %s64, %s67
    %p73 = scmp.eq.s32.totalorder %s14, 0
    %p74 = por %p72, %p73
    %p75 = scmp.ne.s32.totalorder %s64, %s67
    %p76 = scmp.eq.s32.totalorder %s19, 1
    %p77 = por %p75, %p76
    %p78 = scmp.ne.s32.totalorder %s67, %s68
    %p79 = scmp.eq.s32.totalorder %s19, 0
    %p80 = por %p78, %p79
    %p81 = scmp.ne.s32.totalorder %s67, %s68
    %p82 = scmp.eq.s32.totalorder %s20, 1
    %p83 = por %p81, %p82
    %p85 = scmp.ne.s32.totalorder %s68, %s84
    %p86 = scmp.eq.s32.totalorder %s20, 0
    %p87 = por %p85, %p86
    %s88 = ssub.s32 %s21, %s33
    %s89 = ssub.s32 %s22, %s29
    %s90 = sor.u32 %s88, %s89
    %p91 = scmp.eq.s32.totalorder %s90, 0
    %s93 = sadd.s32 %s92, 1
    %s94 = scalar_select %p91, %s92, %s93
    %p97 = pneg %p91
    %p98 = scmp.eq.s32.totalorder %s14, 1
    %p99 = por %p97, %p98
    %p100 = scmp.ne.s32.totalorder %s92, %s95
    %p101 = scmp.eq.s32.totalorder %s14, 0
    %p102 = por %p100, %p101
    %p103 = scmp.ne.s32.totalorder %s92, %s95
    %p104 = scmp.eq.s32.totalorder %s19, 1
    %p105 = por %p103, %p104
    %p106 = scmp.ne.s32.totalorder %s95, %s96
    %p107 = scmp.eq.s32.totalorder %s19, 0
    %p108 = por %p106, %p107
    %p109 = scmp.ne.s32.totalorder %s95, %s96
    %p110 = scmp.eq.s32.totalorder %s20, 1
    %p111 = por %p109, %p110
    %p113 = scmp.ne.s32.totalorder %s96, %s112
    %p114 = scmp.eq.s32.totalorder %s20, 0
    %p115 = por %p113, %p114
    %s116 = ssub.s32 %s21, %s33
    %s117 = ssub.s32 %s22, %s29
    %s118 = sor.u32 %s116, %s117
    %p119 = scmp.eq.s32.totalorder %s118, 0
    %s121 = sadd.s32 %s120, 1
    %s122 = scalar_select %p119, %s120, %s121
    %p125 = pneg %p119
    %p126 = scmp.eq.s32.totalorder %s14, 1
    %p127 = por %p125, %p126
    %p128 = scmp.ne.s32.totalorder %s120, %s123
    %p129 = scmp.eq.s32.totalorder %s14, 0
    %p130 = por %p128, %p129
    %p131 = scmp.ne.s32.totalorder %s120, %s123
    %p132 = scmp.eq.s32.totalorder %s19, 1
    %p133 = por %p131, %p132
    %p134 = scmp.ne.s32.totalorder %s123, %s124
    %p135 = scmp.eq.s32.totalorder %s19, 0
    %p136 = por %p134, %p135
    %p137 = scmp.ne.s32.totalorder %s123, %s124
    %p138 = scmp.eq.s32.totalorder %s20, 1
    %p139 = por %p137, %p138
    %p141 = scmp.ne.s32.totalorder %s124, %s140
    %p142 = scmp.eq.s32.totalorder %s20, 0
    %p143 = por %p141, %p142
    %s145 = sadd.s32 %s144, 1
    %p148 = scmp.eq.s32.totalorder %s14, 1
    %p149 = scmp.ne.s32.totalorder %s144, %s146
    %p150 = scmp.eq.s32.totalorder %s14, 0
    %p151 = por %p149, %p150
    %p152 = scmp.ne.s32.totalorder %s144, %s146
    %p153 = scmp.eq.s32.totalorder %s19, 1
    %p154 = por %p152, %p153
    %p155 = scmp.ne.s32.totalorder %s146, %s147
    %p156 = scmp.eq.s32.totalorder %s19, 0
    %p157 = por %p155, %p156
    %p158 = scmp.ne.s32.totalorder %s146, %s147
    %p159 = scmp.eq.s32.totalorder %s20, 1
    %p160 = por %p158, %p159
    %p162 = scmp.ne.s32.totalorder %s147, %s161
    %p163 = scmp.eq.s32.totalorder %s20, 0
    %p164 = por %p162, %p163
    %s166 = sadd.s32 %s165, 1
    %p169 = scmp.eq.s32.totalorder %s14, 1
    %p170 = scmp.ne.s32.totalorder %s165, %s167
    %p171 = scmp.eq.s32.totalorder %s14, 0
    %p172 = por %p170, %p171
    %p173 = scmp.ne.s32.totalorder %s165, %s167
    %p174 = scmp.eq.s32.totalorder %s19, 1
    %p175 = por %p173, %p174
    %p176 = scmp.ne.s32.totalorder %s167, %s168
    %p177 = scmp.eq.s32.totalorder %s19, 0
    %p178 = por %p176, %p177
    %p179 = scmp.ne.s32.totalorder %s167, %s168
    %p180 = scmp.eq.s32.totalorder %s20, 1
    %p181 = por %p179, %p180
    %p183 = scmp.ne.s32.totalorder %s168, %s182
    %p184 = scmp.eq.s32.totalorder %s20, 0
    %p185 = por %p183, %p184
    %s187 = sadd.s32 %s186, 1
    %p190 = scmp.eq.s32.totalorder %s14, 1
    %p191 = scmp.ne.s32.totalorder %s186, %s188
    %p192 = scmp.eq.s32.totalorder %s14, 0
    %p193 = por %p191, %p192
    %p194 = scmp.ne.s32.totalorder %s186, %s188
    %p195 = scmp.eq.s32.totalorder %s19, 1
    %p196 = por %p194, %p195
    %p197 = scmp.ne.s32.totalorder %s188, %s189
    %p198 = scmp.eq.s32.totalorder %s19, 0
    %p199 = por %p197, %p198
    %p200 = scmp.ne.s32.totalorder %s188, %s189
    %p201 = scmp.eq.s32.totalorder %s20, 1
    %p202 = por %p200, %p201
    %p204 = scmp.ne.s32.totalorder %s189, %s203
    %p205 = scmp.eq.s32.totalorder %s20, 0
    %p206 = por %p204, %p205
    %s208 = sadd.s32 %s207, 1
    %p211 = scmp.eq.s32.totalorder %s14, 1
    %p212 = scmp.ne.s32.totalorder %s207, %s209
    %p213 = scmp.eq.s32.totalorder %s14, 0
    %p214 = por %p212, %p213
    %p215 = scmp.ne.s32.totalorder %s207, %s209
    %p216 = scmp.eq.s32.totalorder %s19, 1
    %p217 = por %p215, %p216
    %p218 = scmp.ne.s32.totalorder %s209, %s210
    %p219 = scmp.eq.s32.totalorder %s19, 0
    %p220 = por %p218, %p219
    %p221 = scmp.ne.s32.totalorder %s209, %s210
    %p222 = scmp.eq.s32.totalorder %s20, 1
    %p223 = por %p221, %p222
    %p225 = scmp.ne.s32.totalorder %s210, %s224
    %p226 = scmp.eq.s32.totalorder %s20, 0
    %p227 = por %p225, %p226
    %s228 = ssub.s32 %s21, %s33
    %s229 = ssub.s32 %s22, %s29
    %s230 = sor.u32 %s228, %s229
    %p231 = scmp.eq.s32.totalorder %s230, 0
    %s233 = sadd.s32 %s232, 1
    %s234 = scalar_select %p231, %s232, %s233
    %p237 = pneg %p231
    %p238 = scmp.eq.s32.totalorder %s14, 1
    %p239 = por %p237, %p238
    %p240 = scmp.ne.s32.totalorder %s232, %s235
    %p241 = scmp.eq.s32.totalorder %s14, 0
    %p242 = por %p240, %p241
    %p243 = scmp.ne.s32.totalorder %s232, %s235
    %p244 = scmp.eq.s32.totalorder %s19, 1
    %p245 = por %p243, %p244
    %p246 = scmp.ne.s32.totalorder %s235, %s236
    %p247 = scmp.eq.s32.totalorder %s19, 0
    %p248 = por %p246, %p247
    %p249 = scmp.ne.s32.totalorder %s235, %s236
    %p250 = scmp.eq.s32.totalorder %s20, 1
    %p251 = por %p249, %p250
    %p253 = scmp.ne.s32.totalorder %s236, %s252
    %p254 = scmp.eq.s32.totalorder %s20, 0
    %p255 = por %p253, %p254
    %p256 = scmp.le.s32.totalorder 1, %s14
    %p257 = scmp.lt.s32.totalorder %s14, 3
    %p258 = pnand %p256, %p257
    %p259 = pneg %p258
    // Predicated region
    $region9: #{chart_parser_forward.1} parent=5 // pred_check
      _
    $region10: #{chart_parser_forward.1} parent=5 // pred_check_branch
      %261 = sbr.rel (%p258) target = $region12
    $region11: #{chart_parser_forward.1} parent=5 // pred_region
      %s262 = ssub.s32 %s14, 1
      // Predicated region
      $region13: #{chart_parser_forward.1} parent=11 // pred_check
        %p263 = pneg %p157
      $region14: #{chart_parser_forward.1} parent=11 // pred_check_branch
        %265 = sbr.rel (%p263) target = $region16
      $region15: #{chart_parser_forward.1} parent=11 // pred_region
        _
      $region16: #{chart_parser_forward.1} parent=11 // pred_fallthru
        _
      // Predicated region
      $region17: #{chart_parser_forward.1} parent=11 // pred_check
        %p266 = pneg %p178
      $region18: #{chart_parser_forward.1} parent=11 // pred_check_branch
        %268 = sbr.rel (%p266) target = $region20
      $region19: #{chart_parser_forward.1} parent=11 // pred_region
        _
      $region20: #{chart_parser_forward.1} parent=11 // pred_fallthru
        _
      // Predicated region
      $region21: #{chart_parser_forward.1} parent=11 // pred_check
        %p269 = pneg %p199
      $region22: #{chart_parser_forward.1} parent=11 // pred_check_branch
        %271 = sbr.rel (%p269) target = $region24
      $region23: #{chart_parser_forward.1} parent=11 // pred_region
        _
      $region24: #{chart_parser_forward.1} parent=11 // pred_fallthru
        _
      // Predicated region
      $region25: #{chart_parser_forward.1} parent=11 // pred_check
        %p272 = pneg %p220
      $region26: #{chart_parser_forward.1} parent=11 // pred_check_branch
        %274 = sbr.rel (%p272) target = $region28
      $region27: #{chart_parser_forward.1} parent=11 // pred_region
        _
      $region28: #{chart_parser_forward.1} parent=11 // pred_fallthru
        _
    $region12: #{chart_parser_forward.1} parent=5 // pred_fallthru
      _
    %p275 = scmp.lt.s32.totalorder %s14, 2
    // Predicated region
    $region29: #{chart_parser_forward.1} parent=5 // pred_check
      %p276 = pneg %p275
    $region30: #{chart_parser_forward.1} parent=5 // pred_check_branch
      %278 = sbr.rel (%p276) target = $region32
    $region31: #{chart_parser_forward.1} parent=5 // pred_region
      // Predicated region
      $region33: #{chart_parser_forward.1} parent=31 // pred_check
        %p279 = pneg %p48
      $region34: #{chart_parser_forward.1} parent=31 // pred_check_branch
        %281 = sbr.rel (%p279) target = $region36
      $region35: #{chart_parser_forward.1} parent=31 // pred_region
        %p282 = scmp.lt.s32.totalorder %s21, 1
        %s283 = scalar_select %p282, %s21, 1
        %p284 = scmp.lt.s32.totalorder %s22, 0
        %s285 = scalar_select %p284, %s22, 0
        %s286 = sadd.s32 %s285, %s283
        %s287 = smul.addr %s286, 8
        %s288 = scalar_lea.vmem %s0, %s287
      $region36: #{chart_parser_forward.1} parent=31 // pred_fallthru
        _
      // Predicated region
      $region37: #{chart_parser_forward.1} parent=31 // pred_check
        %p289 = pneg %p74
      $region38: #{chart_parser_forward.1} parent=31 // pred_check_branch
        %291 = sbr.rel (%p289) target = $region40
      $region39: #{chart_parser_forward.1} parent=31 // pred_region
        %p292 = scmp.lt.s32.totalorder %s21, 1
        %s293 = scalar_select %p292, %s21, 1
        %s294 = smul.addr %s293, 8
        %s295 = scalar_lea.vmem %s1, %s294
      $region40: #{chart_parser_forward.1} parent=31 // pred_fallthru
        _
      // Predicated region
      $region41: #{chart_parser_forward.1} parent=31 // pred_check
        %p296 = pneg %p102
      $region42: #{chart_parser_forward.1} parent=31 // pred_check_branch
        %298 = sbr.rel (%p296) target = $region44
      $region43: #{chart_parser_forward.1} parent=31 // pred_region
        %p299 = scmp.lt.s32.totalorder %s21, 1
        %s300 = scalar_select %p299, %s21, 1
        %p301 = scmp.lt.s32.totalorder %s22, 0
        %s302 = scalar_select %p301, %s22, 0
        %s303 = sadd.s32 %s302, %s300
        %s304 = smul.addr %s303, 8
        %s305 = scalar_lea.vmem %s2, %s304
      $region44: #{chart_parser_forward.1} parent=31 // pred_fallthru
        _
      // Predicated region
      $region45: #{chart_parser_forward.1} parent=31 // pred_check
        %p306 = pneg %p130
      $region46: #{chart_parser_forward.1} parent=31 // pred_check_branch
        %308 = sbr.rel (%p306) target = $region48
      $region47: #{chart_parser_forward.1} parent=31 // pred_region
        %s309 = smul.u32 8, %s22
        %p310 = scmp.lt.s32.totalorder %s21, 1
        %s311 = scalar_select %p310, %s21, 1
        %p312 = scmp.lt.s32.totalorder %s309, 7
        %s313 = scalar_select %p312, %s309, 7
        %s314 = smul.addr %s311, 8
        %s315 = sadd.s32 %s313, %s314
        %s316 = smul.addr %s315, 4
        %s317 = scalar_lea.vmem %s3, %s316
        %s318 = smul.u32 8, %s22
      $region48: #{chart_parser_forward.1} parent=31 // pred_fallthru
        _
    $region32: #{chart_parser_forward.1} parent=5 // pred_fallthru
      _
    %p319 = scmp.le.s32.totalorder 1, %s14
    %p320 = scmp.lt.s32.totalorder %s14, 3
    %p321 = pnand %p319, %p320
    %p322 = pneg %p321
    // Predicated region
    $region49: #{chart_parser_forward.1} parent=5 // pred_check
      _
    $region50: #{chart_parser_forward.1} parent=5 // pred_check_branch
      %324 = sbr.rel (%p321) target = $region52
    $region51: #{chart_parser_forward.1} parent=5 // pred_region
      %s325 = ssub.s32 %s14, 1
      %p326 = scmp.lt.s32.totalorder %s23, 1
      %s327 = scalar_select %p326, %s23, 1
      %p328 = scmp.lt.s32.totalorder %s24, 0
      %s329 = scalar_select %p328, %s24, 0
      %s330 = sadd.s32 %s329, %s327
      %s331 = smul.addr %s330, 8
      %s332 = scalar_lea.vmem %s0, %s331
      %p333 = pneg %p54
      %p334 = pneg %p51
      %p335 = scmp.lt.s32.totalorder %s23, 1
      %s336 = scalar_select %p335, %s23, 1
      %s337 = smul.addr %s336, 8
      %s338 = scalar_lea.vmem %s1, %s337
      %p339 = pneg %p80
      %p340 = pneg %p77
      %p341 = scmp.lt.s32.totalorder %s23, 1
      %s342 = scalar_select %p341, %s23, 1
      %p343 = scmp.lt.s32.totalorder %s24, 0
      %s344 = scalar_select %p343, %s24, 0
      %s345 = sadd.s32 %s344, %s342
      %s346 = smul.addr %s345, 8
      %s347 = scalar_lea.vmem %s2, %s346
      %p348 = pneg %p108
      %p349 = pneg %p105
      %s350 = smul.u32 8, %s24
      %p351 = scmp.lt.s32.totalorder %s23, 1
      %s352 = scalar_select %p351, %s23, 1
      %p353 = scmp.lt.s32.totalorder %s350, 7
      %s354 = scalar_select %p353, %s350, 7
      %s355 = smul.addr %s352, 8
      %s356 = sadd.s32 %s354, %s355
      %s357 = smul.addr %s356, 4
      %s358 = scalar_lea.vmem %s3, %s357
      %p359 = pneg %p136
      %p360 = pneg %p133
      %p361 = pneg %p157
      %p362 = pneg %p154
      %p363 = pneg %p178
      %p364 = pneg %p175
      %p365 = pneg %p199
      %p366 = pneg %p196
      %p367 = pneg %p220
      %p368 = pneg %p217
      %p369 = pneg %p248
      %p370 = pneg %p245
      %s371 = smul.u32 8, %s24
      %p372 = scmp.lt.s32.totalorder %s23, 1
      %s373 = scalar_select %p372, %s23, 1
      %p374 = scmp.lt.s32.totalorder %s371, 7
      %s375 = scalar_select %p374, %s371, 7
      %s376 = smul.addr %s373, 8
      %s377 = sadd.s32 %s375, %s376
      %s378 = smul.addr %s377, 4
      %s379 = scalar_lea.vmem %s8, %s378
      %p380 = scmp.lt.s32.totalorder %s23, 1
      %s381 = scalar_select %p380, %s23, 1
      %p382 = scmp.lt.s32.totalorder %s24, 0
      %s383 = scalar_select %p382, %s24, 0
      %s384 = sadd.s32 %s383, %s381
      %s385 = smul.addr %s384, 8
      %s386 = scalar_lea.vmem %s0, %s385
      %p387 = scmp.lt.s32.totalorder %s23, 1
      %s388 = scalar_select %p387, %s23, 1
      %s389 = smul.addr %s388, 8
      %s390 = scalar_lea.vmem %s1, %s389
      %p391 = scmp.lt.s32.totalorder %s23, 1
      %s392 = scalar_select %p391, %s23, 1
      %p393 = scmp.lt.s32.totalorder %s24, 0
      %s394 = scalar_select %p393, %s24, 0
      %s395 = sadd.s32 %s394, %s392
      %s396 = smul.addr %s395, 8
      %s397 = scalar_lea.vmem %s2, %s396
      %s398 = smul.u32 8, %s24
      %p399 = scmp.lt.s32.totalorder %s23, 1
      %s400 = scalar_select %p399, %s23, 1
      %p401 = scmp.lt.s32.totalorder %s398, 7
      %s402 = scalar_select %p401, %s398, 7
      %s403 = smul.addr %s400, 8
      %s404 = sadd.s32 %s402, %s403
      %s405 = smul.addr %s404, 4
      %s406 = scalar_lea.vmem %s3, %s405
      %s407 = smul.u32 8, %s24
      %s408 = smul.u32 8, %s24
      %p409 = scmp.lt.s32.totalorder %s23, 1
      %s410 = scalar_select %p409, %s23, 1
      %p411 = scmp.lt.s32.totalorder %s408, 7
      %s412 = scalar_select %p411, %s408, 7
      %s413 = smul.addr %s410, 8
      %s414 = sadd.s32 %s412, %s413
      %s415 = smul.addr %s414, 4
      %s416 = scalar_lea.vmem %s8, %s415
      %s417 = smul.u32 8, %s24
      %v419 = vld [vmem:[%s7] sm:$0x1]
      %v420 = vld [vmem:[%s7 + $0x1] sm:$0x1]
      %v421 = vld [vmem:[%s7 + $0x2] sm:$0x1]
      %v422 = vld [vmem:[%s7 + $0x3] sm:$0x1]
      %v423 = vld [vmem:[%s7 + $0x4] sm:$0x1]
      %v424 = vld [vmem:[%s386] sm:$0xff]
      %v425 = vld [vmem:[%s390] sm:$0xff]
      %v427 = vcombine.high %v424, %v424
      %v429 = vunpack.c.l.s4 1966171168
      %v430 = vunpack.c.0.s8 %v429
      %v431 = vlaneseq
      %v432 = vshrl.u32 %v431, 7
      %v433 = vsub.s32 %v430, %v432
      %v434 = vrot.slane %v424, %v433
      %v436 = vunpack.c.l.s4 1966171168
      %v437 = vunpack.c.0.s8 %v436
      %v438 = vlaneseq
      %v439 = vshrl.u32 %v438, 7
      %v440 = vsub.s32 %v437, %v439
      %v441 = vrot.slane %v427, %v440
      %v442 = vcombine.high %v434, %v434
      %v443 = vcombine.high %v441, %v441
      %v445 = vunpack.c.l.s4 1966171168
      %v446 = vunpack.c.0.s8 %v445
      %v447 = vlaneseq
      %v448 = vshrl.u32 %v447, 7
      %v449 = vsub.s32 %v446, %v448
      %v450 = vrot.slane %v434, %v449
      %v452 = vunpack.c.l.s4 1966171168
      %v453 = vunpack.c.0.s8 %v452
      %v454 = vlaneseq
      %v455 = vshrl.u32 %v454, 7
      %v456 = vsub.s32 %v453, %v455
      %v457 = vrot.slane %v441, %v456
      %v459 = vunpack.c.l.s4 1966171168
      %v460 = vunpack.c.0.s8 %v459
      %v461 = vlaneseq
      %v462 = vshrl.u32 %v461, 7
      %v463 = vsub.s32 %v460, %v462
      %v464 = vrot.slane %v442, %v463
      %v466 = vunpack.c.l.s4 1966171168
      %v467 = vunpack.c.0.s8 %v466
      %v468 = vlaneseq
      %v469 = vshrl.u32 %v468, 7
      %v470 = vsub.s32 %v467, %v469
      %v471 = vrot.slane %v443, %v470
      %v472 = vcombine.high %v450, %v450
      %v473 = vcombine.high %v457, %v457
      %v474 = vcombine.high %v464, %v464
      %v475 = vcombine.high %v471, %v471
      %v476 = vlaneseq
      %v477 = vshrl.u32 %v476, 7
      %v478 = vsub.s32 0, %v477
      %v479 = vrot.slane %v450, %v478
      %v480 = vlaneseq
      %v481 = vshrl.u32 %v480, 7
      %v482 = vsub.s32 0, %v481
      %v483 = vrot.slane %v464, %v482
      %v484 = vlaneseq
      %v485 = vshrl.u32 %v484, 7
      %v486 = vsub.s32 0, %v485
      %v487 = vrot.slane %v472, %v486
      %v488 = vlaneseq
      %v489 = vshrl.u32 %v488, 7
      %v490 = vsub.s32 0, %v489
      %v491 = vrot.slane %v474, %v490
      %v492 = vlaneseq
      %v493 = vshrl.u32 %v492, 7
      %v494 = vsub.s32 0, %v493
      %v495 = vrot.slane %v457, %v494
      %v496 = vlaneseq
      %v497 = vshrl.u32 %v496, 7
      %v498 = vsub.s32 0, %v497
      %v499 = vrot.slane %v471, %v498
      %v500 = vlaneseq
      %v501 = vshrl.u32 %v500, 7
      %v502 = vsub.s32 0, %v501
      %v503 = vrot.slane %v473, %v502
      %v504 = vlaneseq
      %v505 = vshrl.u32 %v504, 7
      %v506 = vsub.s32 0, %v505
      %v507 = vrot.slane %v475, %v506
      %v516 = vsub.f32 %v425, %v479
      %v517 = vsub.f32 %v425, %v483
      %v518 = vsub.f32 %v425, %v487
      %v519 = vsub.f32 %v425, %v491
      %v520 = vsub.f32 %v425, %v495
      %v521 = vsub.f32 %v425, %v499
      %v522 = vsub.f32 %v425, %v503
      %v523 = vsub.f32 %v425, %v507
      %v524 = vld [vmem:[%s397] sm:$0xff]
      %v526 = vcombine.high %v524, %v524
      %v528 = vunpack.c.l.s4 1966171168
      %v529 = vunpack.c.0.s8 %v528
      %v530 = vlaneseq
      %v531 = vshrl.u32 %v530, 7
      %v532 = vsub.s32 %v529, %v531
      %v533 = vrot.slane %v524, %v532
      %v535 = vunpack.c.l.s4 1966171168
      %v536 = vunpack.c.0.s8 %v535
      %v537 = vlaneseq
      %v538 = vshrl.u32 %v537, 7
      %v539 = vsub.s32 %v536, %v538
      %v540 = vrot.slane %v526, %v539
      %v541 = vcombine.high %v533, %v533
      %v542 = vcombine.high %v540, %v540
      %v544 = vunpack.c.l.s4 1966171168
      %v545 = vunpack.c.0.s8 %v544
      %v546 = vlaneseq
      %v547 = vshrl.u32 %v546, 7
      %v548 = vsub.s32 %v545, %v547
      %v549 = vrot.slane %v533, %v548
      %v551 = vunpack.c.l.s4 1966171168
      %v552 = vunpack.c.0.s8 %v551
      %v553 = vlaneseq
      %v554 = vshrl.u32 %v553, 7
      %v555 = vsub.s32 %v552, %v554
      %v556 = vrot.slane %v540, %v555
      %v558 = vunpack.c.l.s4 1966171168
      %v559 = vunpack.c.0.s8 %v558
      %v560 = vlaneseq
      %v561 = vshrl.u32 %v560, 7
      %v562 = vsub.s32 %v559, %v561
      %v563 = vrot.slane %v541, %v562
      %v565 = vunpack.c.l.s4 1966171168
      %v566 = vunpack.c.0.s8 %v565
      %v567 = vlaneseq
      %v568 = vshrl.u32 %v567, 7
      %v569 = vsub.s32 %v566, %v568
      %v570 = vrot.slane %v542, %v569
      %v571 = vcombine.high %v549, %v549
      %v572 = vcombine.high %v556, %v556
      %v573 = vcombine.high %v563, %v563
      %v574 = vcombine.high %v570, %v570
      %v575 = vlaneseq
      %v576 = vshrl.u32 %v575, 7
      %v577 = vsub.s32 0, %v576
      %v578 = vrot.slane %v549, %v577
      %v579 = vlaneseq
      %v580 = vshrl.u32 %v579, 7
      %v581 = vsub.s32 0, %v580
      %v582 = vrot.slane %v563, %v581
      %v583 = vlaneseq
      %v584 = vshrl.u32 %v583, 7
      %v585 = vsub.s32 0, %v584
      %v586 = vrot.slane %v571, %v585
      %v587 = vlaneseq
      %v588 = vshrl.u32 %v587, 7
      %v589 = vsub.s32 0, %v588
      %v590 = vrot.slane %v573, %v589
      %v591 = vlaneseq
      %v592 = vshrl.u32 %v591, 7
      %v593 = vsub.s32 0, %v592
      %v594 = vrot.slane %v556, %v593
      %v595 = vlaneseq
      %v596 = vshrl.u32 %v595, 7
      %v597 = vsub.s32 0, %v596
      %v598 = vrot.slane %v570, %v597
      %v599 = vlaneseq
      %v600 = vshrl.u32 %v599, 7
      %v601 = vsub.s32 0, %v600
      %v602 = vrot.slane %v572, %v601
      %v603 = vlaneseq
      %v604 = vshrl.u32 %v603, 7
      %v605 = vsub.s32 0, %v604
      %v606 = vrot.slane %v574, %v605
      %v615 = vld [vmem:[%s406] sm:$0xf]
      %v616 = vld [vmem:[%s406 + $0x4] sm:$0xf]
      %v617 = vld [vmem:[%s406 + $0x8] sm:$0xf]
      %v618 = vld [vmem:[%s406 + $0xc] sm:$0xf]
      %v619 = vld [vmem:[%s406 + $0x10] sm:$0xf]
      %v620 = vld [vmem:[%s406 + $0x14] sm:$0xf]
      %v621 = vld [vmem:[%s406 + $0x18] sm:$0xf]
      %v622 = vld [vmem:[%s406 + $0x1c] sm:$0xf]
      %v623 = vld [vmem:[%s4] sm:$0xf]
      %v624 = vld [vmem:[%s4 + $0x4] sm:$0xf]
      %v625 = vld [vmem:[%s4 + $0x8] sm:$0xf]
      %v626 = vld [vmem:[%s4 + $0xc] sm:$0xf]
      %v627 = vld [vmem:[%s4 + $0x10] sm:$0xf]
      %v628 = vld [vmem:[%s4 + $0x14] sm:$0xf]
      %v629 = vld [vmem:[%s4 + $0x18] sm:$0xf]
      %v630 = vld [vmem:[%s4 + $0x1c] sm:$0xf]
      %v631 = vld [vmem:[%s4 + $0x20] sm:$0xf]
      %v632 = vld [vmem:[%s4 + $0x24] sm:$0xf]
      %v633 = vld [vmem:[%s4 + $0x28] sm:$0xf]
      %v634 = vld [vmem:[%s4 + $0x2c] sm:$0xf]
      %v635 = vld [vmem:[%s4 + $0x30] sm:$0xf]
      %v636 = vld [vmem:[%s4 + $0x34] sm:$0xf]
      %v637 = vld [vmem:[%s4 + $0x38] sm:$0xf]
      %v638 = vld [vmem:[%s4 + $0x3c] sm:$0xf]
      %v639 = vlaneseq
      %v640 = vshrl.u32 %v639, 7
      %v641 = vsub.s32 0, %v640
      %v642 = vrot.slane %v419, %v641
      %v651 = vunpack.c.l.b16 %v615
      %v652 = vunpack.c.l.b16 %v616
      %v653 = vunpack.c.l.b16 %v617
      %v654 = vunpack.c.l.b16 %v618
      %v655 = vunpack.c.l.b16 %v619
      %v656 = vunpack.c.l.b16 %v620
      %v657 = vunpack.c.l.b16 %v621
      %v658 = vunpack.c.l.b16 %v622
      %v659 = vpack.c.b16 %v652, %v651
      %v660 = vpack.c.b16 %v654, %v653
      %v661 = vpack.c.b16 %v656, %v655
      %v662 = vpack.c.b16 %v658, %v657
      %v683 = vunpack.c.l.b16 %v623
      %v684 = vunpack.c.l.b16 %v624
      %v685 = vunpack.c.l.b16 %v625
      %v686 = vunpack.c.l.b16 %v626
      %v687 = vunpack.c.l.b16 %v627
      %v688 = vunpack.c.l.b16 %v628
      %v689 = vunpack.c.l.b16 %v629
      %v690 = vunpack.c.l.b16 %v630
      %v691 = vunpack.c.l.b16 %v631
      %v692 = vunpack.c.l.b16 %v632
      %v693 = vunpack.c.l.b16 %v633
      %v694 = vunpack.c.l.b16 %v634
      %v695 = vunpack.c.l.b16 %v635
      %v696 = vunpack.c.l.b16 %v636
      %v697 = vunpack.c.l.b16 %v637
      %v698 = vunpack.c.l.b16 %v638
      %v699 = vpack.c.b16 %v684, %v683
      %v700 = vpack.c.b16 %v686, %v685
      %v701 = vpack.c.b16 %v688, %v687
      %v702 = vpack.c.b16 %v690, %v689
      %v703 = vpack.c.b16 %v692, %v691
      %v704 = vpack.c.b16 %v694, %v693
      %v705 = vpack.c.b16 %v696, %v695
      %v706 = vpack.c.b16 %v698, %v697
      %715 = vmatprep.subr.bf16.mxu0 0
      %716 = vmatpush1.bf16.msra.mxu0 %v699
      %717 = vmatprep.subr.bf16.mxu0 0
      %718 = vmatpush1.bf16.msra.mxu0 %v700
      %719 = vmatprep.subr.bf16.mxu0 0
      %720 = vmatpush1.bf16.msra.mxu0 %v701
      %721 = vmatprep.subr.bf16.mxu0 0
      %722 = vmatpush1.bf16.msra.mxu0 %v702
      %723 = vmatprep.subr.bf16.mxu0 0
      %724 = vmatpush1.bf16.msra.mxu0 %v703
      %725 = vmatprep.subr.bf16.mxu0 0
      %726 = vmatpush1.bf16.msra.mxu0 %v704
      %727 = vmatprep.subr.bf16.mxu0 0
      %728 = vmatpush1.bf16.msra.mxu0 %v705
      %729 = vmatprep.subr.bf16.mxu0 0
      %730 = vmatpush1.bf16.msra.mxu0 %v706
      %731 = vmatprep.subr.bf16.mxu0 0
      %732 = vmatpush1.bf16.msra.mxu0 0
      %733 = vmatprep.subr.bf16.mxu0 0
      %734 = vmatpush1.bf16.msra.mxu0 0
      %735 = vmatprep.subr.bf16.mxu0 0
      %736 = vmatpush1.bf16.msra.mxu0 0
      %737 = vmatprep.subr.bf16.mxu0 0
      %738 = vmatpush1.bf16.msra.mxu0 0
      %739 = vmatprep.subr.bf16.mxu0 0
      %740 = vmatpush1.bf16.msra.mxu0 0
      %741 = vmatprep.subr.bf16.mxu0 0
      %742 = vmatpush1.bf16.msra.mxu0 0
      %743 = vmatprep.subr.bf16.mxu0 0
      %744 = vmatpush1.bf16.msra.mxu0 0
      %745 = vmatprep.subr.bf16.mxu0 0
      %746 = vmatpush1.bf16.msra.mxu0 0
      %747 = vmatprep.mubr.bf16.mxu0 0
      %748 = vmatmul.mubr.bf16.gmra.mrb[0].mxu0 %v659
      %v749 = vpop.f32.mrb[0].mxu0
      %v750 = vadd.f32 %v642, %v749
      %v751 = vpop.f32.mrb[0].mxu0
      %v752 = vpop.f32.mrb[0].mxu0
      %v753 = vadd.f32 %v642, %v752
      %v754 = vpop.f32.mrb[0].mxu0
      %755 = vmatprep.mubr.bf16.mxu0 0
      %756 = vmatmul.mubr.bf16.gmra.mrb[0].mxu0 %v660
      %v757 = vpop.f32.mrb[0].mxu0
      %v758 = vadd.f32 %v642, %v757
      %v759 = vpop.f32.mrb[0].mxu0
      %v760 = vpop.f32.mrb[0].mxu0
      %v761 = vadd.f32 %v642, %v760
      %v762 = vpop.f32.mrb[0].mxu0
      %763 = vmatprep.mubr.bf16.mxu0 0
      %764 = vmatmul.mubr.bf16.gmra.mrb[0].mxu0 %v661
      %v765 = vpop.f32.mrb[0].mxu0
      %v766 = vadd.f32 %v642, %v765
      %v767 = vpop.f32.mrb[0].mxu0
      %v768 = vpop.f32.mrb[0].mxu0
      %v769 = vadd.f32 %v642, %v768
      %v770 = vpop.f32.mrb[0].mxu0
      %771 = vmatprep.mubr.bf16.mxu0 0
      %772 = vmatmul.mubr.bf16.gmra.mrb[0].mxu0 %v662
      %v773 = vpop.f32.mrb[0].mxu0
      %v774 = vadd.f32 %v642, %v773
      %v775 = vpop.f32.mrb[0].mxu0
      %v776 = vpop.f32.mrb[0].mxu0
      %v777 = vadd.f32 %v642, %v776
      %v778 = vpop.f32.mrb[0].mxu0
      %779 = vdwg.mxu0
      %v780 = vmul.f32 %v750, %v516
      %v781 = vmul.f32 %v753, %v517
      %v782 = vmul.f32 %v758, %v518
      %v783 = vmul.f32 %v761, %v519
      %v784 = vmul.f32 %v766, %v520
      %v785 = vmul.f32 %v769, %v521
      %v786 = vmul.f32 %v774, %v522
      %v787 = vmul.f32 %v777, %v523
      %v788 = vadd.f32 %v780, %v578
      %v789 = vadd.f32 %v781, %v582
      %v790 = vadd.f32 %v782, %v586
      %v791 = vadd.f32 %v783, %v590
      %v792 = vadd.f32 %v784, %v594
      %v793 = vadd.f32 %v785, %v598
      %v794 = vadd.f32 %v786, %v602
      %v795 = vadd.f32 %v787, %v606
      %v796 = vpack.c.bf16 %v789, %v788
      %v797 = vpack.c.bf16 %v791, %v790
      %v798 = vpack.c.bf16 %v793, %v792
      %v799 = vpack.c.bf16 %v795, %v794
      %v800 = vld [vmem:[%s5] sm:$0xf]
      %v801 = vld [vmem:[%s5 + $0x4] sm:$0xf]
      %v802 = vld [vmem:[%s5 + $0x8] sm:$0xf]
      %v803 = vld [vmem:[%s5 + $0xc] sm:$0xf]
      %v804 = vlaneseq
      %v805 = vshrl.u32 %v804, 7
      %v806 = vsub.s32 0, %v805
      %v807 = vrot.slane %v420, %v806
      %v812 = vunpack.c.l.b16 %v800
      %v813 = vunpack.c.l.b16 %v801
      %v814 = vunpack.c.l.b16 %v802
      %v815 = vunpack.c.l.b16 %v803
      %v816 = vpack.c.b16 %v813, %v812
      %v817 = vpack.c.b16 %v815, %v814
      %vm820 = vcmask 261120
      %v822 = vsel %vm820, %v796, 0
      %v825 = vsel %vm820, %v797, 0
      %v828 = vsel %vm820, %v798, 0
      %v831 = vsel %vm820, %v799, 0
      %833 = vmatprep.subr.bf16.mxu0 0
      %834 = vmatpush1.bf16.msra.mxu0 %v816
      %835 = vmatprep.subr.bf16.mxu0 0
      %836 = vmatpush1.bf16.msra.mxu0 %v817
      %837 = vmatprep.subr.bf16.mxu0 0
      %838 = vmatpush1.bf16.msra.mxu0 0
      %839 = vmatprep.subr.bf16.mxu0 0
      %840 = vmatpush1.bf16.msra.mxu0 0
      %841 = vmatprep.subr.bf16.mxu0 0
      %842 = vmatpush1.bf16.msra.mxu0 0
      %843 = vmatprep.subr.bf16.mxu0 0
      %844 = vmatpush1.bf16.msra.mxu0 0
      %845 = vmatprep.subr.bf16.mxu0 0
      %846 = vmatpush1.bf16.msra.mxu0 0
      %847 = vmatprep.subr.bf16.mxu0 0
      %848 = vmatpush1.bf16.msra.mxu0 0
      %849 = vmatprep.subr.bf16.mxu0 0
      %850 = vmatpush1.bf16.msra.mxu0 0
      %851 = vmatprep.subr.bf16.mxu0 0
      %852 = vmatpush1.bf16.msra.mxu0 0
      %853 = vmatprep.subr.bf16.mxu0 0
      %854 = vmatpush1.bf16.msra.mxu0 0
      %855 = vmatprep.subr.bf16.mxu0 0
      %856 = vmatpush1.bf16.msra.mxu0 0
      %857 = vmatprep.subr.bf16.mxu0 0
      %858 = vmatpush1.bf16.msra.mxu0 0
      %859 = vmatprep.subr.bf16.mxu0 0
      %860 = vmatpush1.bf16.msra.mxu0 0
      %861 = vmatprep.subr.bf16.mxu0 0
      %862 = vmatpush1.bf16.msra.mxu0 0
      %863 = vmatprep.subr.bf16.mxu0 0
      %864 = vmatpush1.bf16.msra.mxu0 0
      %865 = vmatprep.mubr.bf16.mxu0 0
      %866 = vmatmul.mubr.bf16.gmra.mrb[0].mxu0 %v822
      %v867 = vpop.f32.mrb[0].mxu0
      %v868 = vadd.f32 %v807, %v867
      %v869 = vpop.f32.mrb[0].mxu0
      %v870 = vpop.f32.mrb[0].mxu0
      %v871 = vadd.f32 %v807, %v870
      %v872 = vpop.f32.mrb[0].mxu0
      %873 = vmatprep.mubr.bf16.mxu0 0
      %874 = vmatmul.mubr.bf16.gmra.mrb[0].mxu0 %v825
      %v875 = vpop.f32.mrb[0].mxu0
      %v876 = vadd.f32 %v807, %v875
      %v877 = vpop.f32.mrb[0].mxu0
      %v878 = vpop.f32.mrb[0].mxu0
      %v879 = vadd.f32 %v807, %v878
      %v880 = vpop.f32.mrb[0].mxu0
      %881 = vmatprep.mubr.bf16.mxu0 0
      %882 = vmatmul.mubr.bf16.gmra.mrb[0].mxu0 %v828
      %v883 = vpop.f32.mrb[0].mxu0
      %v884 = vadd.f32 %v807, %v883
      %v885 = vpop.f32.mrb[0].mxu0
      %v886 = vpop.f32.mrb[0].mxu0
      %v887 = vadd.f32 %v807, %v886
      %v888 = vpop.f32.mrb[0].mxu0
      %889 = vmatprep.mubr.bf16.mxu0 0
      %890 = vmatmul.mubr.bf16.gmra.mrb[0].mxu0 %v831
      %v891 = vpop.f32.mrb[0].mxu0
      %v892 = vadd.f32 %v807, %v891
      %v893 = vpop.f32.mrb[0].mxu0
      %v894 = vpop.f32.mrb[0].mxu0
      %v895 = vadd.f32 %v807, %v894
      %v896 = vpop.f32.mrb[0].mxu0
      %897 = vdwg.mxu0
      %v898 = vsel %vm820, %v868, 0.0
      %899 = vadd.xlane.f32.xlu0 %v898
      %v900 = vpop.xlane.xlu0 %899
      %v901 = vsel %vm820, %v871, 0.0
      %902 = vadd.xlane.f32.xlu0 %v901
      %v903 = vpop.xlane.xlu0 %902
      %v904 = vsel %vm820, %v876, 0.0
      %905 = vadd.xlane.f32.xlu0 %v904
      %v906 = vpop.xlane.xlu0 %905
      %v907 = vsel %vm820, %v879, 0.0
      %908 = vadd.xlane.f32.xlu0 %v907
      %v909 = vpop.xlane.xlu0 %908
      %v910 = vsel %vm820, %v884, 0.0
      %911 = vadd.xlane.f32.xlu0 %v910
      %v912 = vpop.xlane.xlu0 %911
      %v913 = vsel %vm820, %v887, 0.0
      %914 = vadd.xlane.f32.xlu0 %v913
      %v915 = vpop.xlane.xlu0 %914
      %v916 = vsel %vm820, %v892, 0.0
      %917 = vadd.xlane.f32.xlu0 %v916
      %v918 = vpop.xlane.xlu0 %917
      %v919 = vsel %vm820, %v895, 0.0
      %920 = vadd.xlane.f32.xlu0 %v919
      %v921 = vpop.xlane.xlu0 %920
      %v922 = vrcp.pop 32.0
      %v923 = vmul.f32 %v900, %v922
      %v924 = vmul.f32 %v903, %v922
      %v925 = vmul.f32 %v906, %v922
      %v926 = vmul.f32 %v909, %v922
      %v927 = vmul.f32 %v912, %v922
      %v928 = vmul.f32 %v915, %v922
      %v929 = vmul.f32 %v918, %v922
      %v930 = vmul.f32 %v921, %v922
      %v931 = vsub.f32 %v868, %v923
      %v932 = vsub.f32 %v871, %v924
      %v933 = vsub.f32 %v876, %v925
      %v934 = vsub.f32 %v879, %v926
      %v935 = vsub.f32 %v884, %v927
      %v936 = vsub.f32 %v887, %v928
      %v937 = vsub.f32 %v892, %v929
      %v938 = vsub.f32 %v895, %v930
      %v939 = vmul.f32 %v931, %v931
      %v940 = vmul.f32 %v932, %v932
      %v941 = vmul.f32 %v933, %v933
      %v942 = vmul.f32 %v934, %v934
      %v943 = vmul.f32 %v935, %v935
      %v944 = vmul.f32 %v936, %v936
      %v945 = vmul.f32 %v937, %v937
      %v946 = vmul.f32 %v938, %v938
      %v947 = vsel %vm820, %v939, 0.0
      %948 = vadd.xlane.f32.xlu0 %v947
      %v949 = vpop.xlane.xlu0 %948
      %v950 = vsel %vm820, %v940, 0.0
      %951 = vadd.xlane.f32.xlu0 %v950
      %v952 = vpop.xlane.xlu0 %951
      %v953 = vsel %vm820, %v941, 0.0
      %954 = vadd.xlane.f32.xlu0 %v953
      %v955 = vpop.xlane.xlu0 %954
      %v956 = vsel %vm820, %v942, 0.0
      %957 = vadd.xlane.f32.xlu0 %v956
      %v958 = vpop.xlane.xlu0 %957
      %v959 = vsel %vm820, %v943, 0.0
      %960 = vadd.xlane.f32.xlu0 %v959
      %v961 = vpop.xlane.xlu0 %960
      %v962 = vsel %vm820, %v944, 0.0
      %963 = vadd.xlane.f32.xlu0 %v962
      %v964 = vpop.xlane.xlu0 %963
      %v965 = vsel %vm820, %v945, 0.0
      %966 = vadd.xlane.f32.xlu0 %v965
      %v967 = vpop.xlane.xlu0 %966
      %v968 = vsel %vm820, %v946, 0.0
      %969 = vadd.xlane.f32.xlu0 %v968
      %v970 = vpop.xlane.xlu0 %969
      %v971 = vmul.f32 %v949, %v922
      %v972 = vmul.f32 %v952, %v922
      %v973 = vmul.f32 %v955, %v922
      %v974 = vmul.f32 %v958, %v922
      %v975 = vmul.f32 %v961, %v922
      %v976 = vmul.f32 %v964, %v922
      %v977 = vmul.f32 %v967, %v922
      %v978 = vmul.f32 %v970, %v922
      %v979 = vadd.f32 %v971, 1e-05
      %v980 = vadd.f32 %v972, 1e-05
      %v981 = vadd.f32 %v973, 1e-05
      %v982 = vadd.f32 %v974, 1e-05
      %v983 = vadd.f32 %v975, 1e-05
      %v984 = vadd.f32 %v976, 1e-05
      %v985 = vadd.f32 %v977, 1e-05
      %v986 = vadd.f32 %v978, 1e-05
      %v987 = vrsqrt.pop %v979
      %v988 = vrsqrt.pop %v980
      %v989 = vrsqrt.pop %v981
      %v990 = vrsqrt.pop %v982
      %v991 = vrsqrt.pop %v983
      %v992 = vrsqrt.pop %v984
      %v993 = vrsqrt.pop %v985
      %v994 = vrsqrt.pop %v986
      %v995 = vmul.f32 %v931, %v987
      %v996 = vmul.f32 %v932, %v988
      %v997 = vmul.f32 %v933, %v989
      %v998 = vmul.f32 %v934, %v990
      %v999 = vmul.f32 %v935, %v991
      %v1000 = vmul.f32 %v936, %v992
      %v1001 = vmul.f32 %v937, %v993
      %v1002 = vmul.f32 %v938, %v994
      %v1003 = vlaneseq
      %v1004 = vshrl.u32 %v1003, 7
      %v1005 = vsub.s32 0, %v1004
      %v1006 = vrot.slane %v421, %v1005
      %v1007 = vmul.f32 %v995, %v1006
      %v1008 = vmul.f32 %v996, %v1006
      %v1009 = vmul.f32 %v997, %v1006
      %v1010 = vmul.f32 %v998, %v1006
      %v1011 = vmul.f32 %v999, %v1006
      %v1012 = vmul.f32 %v1000, %v1006
      %v1013 = vmul.f32 %v1001, %v1006
      %v1014 = vmul.f32 %v1002, %v1006
      %v1015 = vlaneseq
      %v1016 = vshrl.u32 %v1015, 7
      %v1017 = vsub.s32 0, %v1016
      %v1018 = vrot.slane %v422, %v1017
      %v1019 = vadd.f32 %v1007, %v1018
      %v1020 = vadd.f32 %v1008, %v1018
      %v1021 = vadd.f32 %v1009, %v1018
      %v1022 = vadd.f32 %v1010, %v1018
      %v1023 = vadd.f32 %v1011, %v1018
      %v1024 = vadd.f32 %v1012, %v1018
      %v1025 = vadd.f32 %v1013, %v1018
      %v1026 = vadd.f32 %v1014, %v1018
      %v1027 = vmax.f32 %v1019, 0.0
      %v1028 = vmax.f32 %v1020, 0.0
      %v1029 = vmax.f32 %v1021, 0.0
      %v1030 = vmax.f32 %v1022, 0.0
      %v1031 = vmax.f32 %v1023, 0.0
      %v1032 = vmax.f32 %v1024, 0.0
      %v1033 = vmax.f32 %v1025, 0.0
      %v1034 = vmax.f32 %v1026, 0.0
      %v1035 = vpack.c.bf16 %v1028, %v1027
      %v1036 = vpack.c.bf16 %v1030, %v1029
      %v1037 = vpack.c.bf16 %v1032, %v1031
      %v1038 = vpack.c.bf16 %v1034, %v1033
      %v1039 = vld [vmem:[%s6] sm:$0xf]
      %v1040 = vld [vmem:[%s6 + $0x4] sm:$0xf]
      %v1041 = vld [vmem:[%s6 + $0x8] sm:$0xf]
      %v1042 = vld [vmem:[%s6 + $0xc] sm:$0xf]
      %v1043 = vlaneseq
      %v1044 = vshrl.u32 %v1043, 7
      %v1045 = vsub.s32 0, %v1044
      %v1046 = vrot.slane %v423, %v1045
      %v1051 = vunpack.c.l.b16 %v1039
      %v1052 = vunpack.c.l.b16 %v1040
      %v1053 = vunpack.c.l.b16 %v1041
      %v1054 = vunpack.c.l.b16 %v1042
      %v1055 = vpack.c.b16 %v1052, %v1051
      %v1056 = vpack.c.b16 %v1054, %v1053
      %v1060 = vsel %vm820, %v1035, 0
      %v1063 = vsel %vm820, %v1036, 0
      %v1066 = vsel %vm820, %v1037, 0
      %v1069 = vsel %vm820, %v1038, 0
      %1071 = vmatprep.subr.bf16.mxu0 0
      %1072 = vmatpush1.bf16.msra.mxu0 %v1055
      %1073 = vmatprep.subr.bf16.mxu0 0
      %1074 = vmatpush1.bf16.msra.mxu0 %v1056
      %1075 = vmatprep.subr.bf16.mxu0 0
      %1076 = vmatpush1.bf16.msra.mxu0 0
      %1077 = vmatprep.subr.bf16.mxu0 0
      %1078 = vmatpush1.bf16.msra.mxu0 0
      %1079 = vmatprep.subr.bf16.mxu0 0
      %1080 = vmatpush1.bf16.msra.mxu0 0
      %1081 = vmatprep.subr.bf16.mxu0 0
      %1082 = vmatpush1.bf16.msra.mxu0 0
      %1083 = vmatprep.subr.bf16.mxu0 0
      %1084 = vmatpush1.bf16.msra.mxu0 0
      %1085 = vmatprep.subr.bf16.mxu0 0
      %1086 = vmatpush1.bf16.msra.mxu0 0
      %1087 = vmatprep.subr.bf16.mxu0 0
      %1088 = vmatpush1.bf16.msra.mxu0 0
      %1089 = vmatprep.subr.bf16.mxu0 0
      %1090 = vmatpush1.bf16.msra.mxu0 0
      %1091 = vmatprep.subr.bf16.mxu0 0
      %1092 = vmatpush1.bf16.msra.mxu0 0
      %1093 = vmatprep.subr.bf16.mxu0 0
      %1094 = vmatpush1.bf16.msra.mxu0 0
      %1095 = vmatprep.subr.bf16.mxu0 0
      %1096 = vmatpush1.bf16.msra.mxu0 0
      %1097 = vmatprep.subr.bf16.mxu0 0
      %1098 = vmatpush1.bf16.msra.mxu0 0
      %1099 = vmatprep.subr.bf16.mxu0 0
      %1100 = vmatpush1.bf16.msra.mxu0 0
      %1101 = vmatprep.subr.bf16.mxu0 0
      %1102 = vmatpush1.bf16.msra.mxu0 0
      %1103 = vmatprep.mubr.bf16.mxu0 0
      %1104 = vmatmul.mubr.bf16.gmra.mrb[0].mxu0 %v1060
      %v1105 = vpop.f32.mrb[0].mxu0
      %v1106 = vadd.f32 %v1046, %v1105
      %v1107 = vpop.f32.mrb[0].mxu0
      %v1108 = vpop.f32.mrb[0].mxu0
      %v1109 = vadd.f32 %v1046, %v1108
      %v1110 = vpop.f32.mrb[0].mxu0
      %1111 = vmatprep.mubr.bf16.mxu0 0
      %1112 = vmatmul.mubr.bf16.gmra.mrb[0].mxu0 %v1063
      %v1113 = vpop.f32.mrb[0].mxu0
      %v1114 = vadd.f32 %v1046, %v1113
      %v1115 = vpop.f32.mrb[0].mxu0
      %v1116 = vpop.f32.mrb[0].mxu0
      %v1117 = vadd.f32 %v1046, %v1116
      %v1118 = vpop.f32.mrb[0].mxu0
      %1119 = vmatprep.mubr.bf16.mxu0 0
      %1120 = vmatmul.mubr.bf16.gmra.mrb[0].mxu0 %v1066
      %v1121 = vpop.f32.mrb[0].mxu0
      %v1122 = vadd.f32 %v1046, %v1121
      %v1123 = vpop.f32.mrb[0].mxu0
      %v1124 = vpop.f32.mrb[0].mxu0
      %v1125 = vadd.f32 %v1046, %v1124
      %v1126 = vpop.f32.mrb[0].mxu0
      %1127 = vmatprep.mubr.bf16.mxu0 0
      %1128 = vmatmul.mubr.bf16.gmra.mrb[0].mxu0 %v1069
      %v1129 = vpop.f32.mrb[0].mxu0
      %v1130 = vadd.f32 %v1046, %v1129
      %v1131 = vpop.f32.mrb[0].mxu0
      %v1132 = vpop.f32.mrb[0].mxu0
      %v1133 = vadd.f32 %v1046, %v1132
      %v1134 = vpop.f32.mrb[0].mxu0
      %1135 = vdwg.mxu0
      %v1136 = vpack.c.bf16 %v1109, %v1106
      %v1137 = vpack.c.bf16 %v1117, %v1114
      %v1138 = vpack.c.bf16 %v1125, %v1122
      %v1139 = vpack.c.bf16 %v1133, %v1130
      %v1144 = vunpack.c.l.b16 %v1136
      %v1145 = vunpack.c.h.b16 %v1136
      %v1146 = vunpack.c.l.b16 %v1137
      %v1147 = vunpack.c.h.b16 %v1137
      %v1148 = vunpack.c.l.b16 %v1138
      %v1149 = vunpack.c.h.b16 %v1138
      %v1150 = vunpack.c.l.b16 %v1139
      %v1151 = vunpack.c.h.b16 %v1139
      %v1152 = vpack.c.b16 %v1144, %v1144
      %v1153 = vpack.c.b16 %v1145, %v1145
      %v1154 = vpack.c.b16 %v1146, %v1146
      %v1155 = vpack.c.b16 %v1147, %v1147
      %v1156 = vpack.c.b16 %v1148, %v1148
      %v1157 = vpack.c.b16 %v1149, %v1149
      %v1158 = vpack.c.b16 %v1150, %v1150
      %v1159 = vpack.c.b16 %v1151, %v1151
      %1168 = vst [vmem:[%s416] sm:$0xf] %v1152
      %1169 = vst [vmem:[%s416 + $0x4] sm:$0xf] %v1153
      %1170 = vst [vmem:[%s416 + $0x8] sm:$0xf] %v1154
      %1171 = vst [vmem:[%s416 + $0xc] sm:$0xf] %v1155
      %1172 = vst [vmem:[%s416 + $0x10] sm:$0xf] %v1156
      %1173 = vst [vmem:[%s416 + $0x14] sm:$0xf] %v1157
      %1174 = vst [vmem:[%s416 + $0x18] sm:$0xf] %v1158
      %1175 = vst [vmem:[%s416 + $0x1c] sm:$0xf] %v1159
      %s1176 = smul.u32 8, %s24
      %p1177 = scmp.lt.s32.totalorder %s23, 1
      %s1178 = scalar_select %p1177, %s23, 1
      %p1179 = scmp.lt.s32.totalorder %s1176, 7
      %s1180 = scalar_select %p1179, %s1176, 7
      %s1181 = smul.addr %s1178, 8
      %s1182 = sadd.s32 %s1180, %s1181
      %s1183 = smul.addr %s1182, 4
      %s1184 = scalar_lea.vmem %s8, %s1183
      // Predicated region
      $region53: #{chart_parser_forward.1} parent=51 // pred_check
        %p1185 = pneg %p245
      $region54: #{chart_parser_forward.1} parent=51 // pred_check_branch
        %1187 = sbr.rel (%p1185) target = $region56
      $region55: #{chart_parser_forward.1} parent=51 // pred_region
        %s1188 = smul.u32 8, %s24
      $region56: #{chart_parser_forward.1} parent=51 // pred_fallthru
        _
    $region52: #{chart_parser_forward.1} parent=5 // pred_fallthru
      _
    %p1189 = scmp.le.s32.totalorder 2, %s14
    // Predicated region
    $region57: #{chart_parser_forward.1} parent=5 // pred_check
      %p1190 = pneg %p1189
    $region58: #{chart_parser_forward.1} parent=5 // pred_check_branch
      %1192 = sbr.rel (%p1190) target = $region60
    $region59: #{chart_parser_forward.1} parent=5 // pred_region
      %s1193 = ssub.s32 %s14, 2
      // Predicated region
      $region61: #{chart_parser_forward.1} parent=59 // pred_check
        %p1194 = pneg %p251
      $region62: #{chart_parser_forward.1} parent=59 // pred_check_branch
        %1196 = sbr.rel (%p1194) target = $region64
      $region63: #{chart_parser_forward.1} parent=59 // pred_region
        %s1197 = smul.u32 8, %s26
        %p1198 = scmp.lt.s32.totalorder %s25, 1
        %s1199 = scalar_select %p1198, %s25, 1
        %p1200 = scmp.lt.s32.totalorder %s1197, 7
        %s1201 = scalar_select %p1200, %s1197, 7
        %s1202 = smul.addr %s1199, 8
        %s1203 = sadd.s32 %s1201, %s1202
        %s1204 = smul.addr %s1203, 4
        %s1205 = scalar_lea.vmem %s8, %s1204
      $region64: #{chart_parser_forward.1} parent=59 // pred_fallthru
        _
    $region60: #{chart_parser_forward.1} parent=5 // pred_fallthru
      _
  $region6: #{chart_parser_forward.1} parent=0 // loop_footer
    %s18 = sadd.s32 1, %s14
  $region7: #{chart_parser_forward.1} parent=0 // loop_footer_branch
    %13 = sbr.rel target = $region3
  $region8: #{chart_parser_forward.1} parent=0 // loop_exit
    _

</llo_original>
